<compile_context>
chip_gen: v7x
topology: tpu7x:2x2x1
jax: 0.10.0
libtpu: 0.0.40
codegen_flags: <defaults>
</compile_context>

<pallas_src>
import functools

import jax
import jax.numpy as jnp
from jax.experimental import pallas as pl
from jax.experimental.pallas import tpu as pltpu  # noqa: F401  (kept for TPU backend)


def _round_up(n, m):
    return ((n + m - 1) // m) * m


def _round8(n):
    return _round_up(n, 8)


def lstm_linear_relu_kernel(x_ref, p_ref, out_ref, *, B, T, I, H,
                            off_whh, off_bias, off_wlin, off_blin):
    """Single-invocation kernel: full-sequence LSTM -> Linear -> ReLU.

    x_ref  : (T*B, I)      time-major flattened input
    p_ref  : (rows, W)     packed parameter slab (all section starts 8-aligned):
                             [0:I]                 W_ih^T (i/f/o cols pre-scaled by 0.5)
                             [off_whh : +H]        W_hh^T (i/f/o cols pre-scaled by 0.5)
                             [off_bias]            b_ih + b_hh (i/f/o pre-scaled by 0.5)
                             [off_wlin : +H]       W_lin^T zero-padded to W lanes
                             [off_blin]            b_lin  zero-padded to W lanes
    out_ref: (T*B, W)      lane-dense output; columns >= O are zero
    """
    wih = p_ref[0:I, :]                           # (I, 4H)
    whh = p_ref[off_whh:off_whh + H, :]           # (H, 4H)
    bias = p_ref[off_bias:off_bias + 1, :]        # (1, 4H)
    wlin = p_ref[off_wlin:off_wlin + H, :]        # (H, W)  cols >= O are zero
    blin = p_ref[off_blin:off_blin + 1, :]        # (1, W)  cols >= O are zero

    # Hoisted non-recurrent projection: one MXU pass for all T*B rows.
    gates_x = jnp.dot(x_ref[...], wih,
                      preferred_element_type=jnp.float32) + bias      # (T*B, 4H)

    h = jnp.zeros((B, H), jnp.float32)
    c = jnp.zeros((B, H), jnp.float32)
    hs = []
    for t in range(T):  # T = 8: static unroll (switch to fori_loop if T grows)
        gates = gates_x[t * B:(t + 1) * B, :] + jnp.dot(
            h, whh, preferred_element_type=jnp.float32)                # (B, 4H)
        # One tanh over all 4H lanes: i/f/o columns were pre-scaled by 0.5 in
        # the wrapper, so sigmoid(z) = 0.5*(tanh(z/2)+1) and g = tanh(z).
        tg = jnp.tanh(gates)
        i_g = 0.5 * (tg[:, 0 * H:1 * H] + 1.0)
        f_g = 0.5 * (tg[:, 1 * H:2 * H] + 1.0)
        g_g = tg[:, 2 * H:3 * H]
        o_g = 0.5 * (tg[:, 3 * H:4 * H] + 1.0)
        c = f_g * c + i_g * g_g
        h = o_g * jnp.tanh(c)
        hs.append(h)                               # stays in vregs (~2 KB total)

    hs_all = jnp.concatenate(hs, axis=0)           # (T*B, H), time-major
    y = jnp.dot(hs_all, wlin,
                preferred_element_type=jnp.float32) + blin             # (T*B, W)
    out_ref[...] = jnp.maximum(y, 0.0)             # single lane-dense store


def leadtime_lstm_forward(x, weight_ih, weight_hh, bias_ih, bias_hh, lin_w, lin_b):
    """Forward of Leadtime_LSTM: nn.LSTM(batch_first) -> nn.Linear -> ReLU.

    x: (B, T, I).  PyTorch-native parameter shapes:
      weight_ih (4H, I), weight_hh (4H, H), bias_ih/bias_hh (4H,),
      lin_w (O, H), lin_b (O,).
    Returns (B, T, O).
    """
    B, T, I = x.shape
    H = weight_hh.shape[1]
    O = lin_w.shape[0]
    L = 4 * H
    width = max(_round_up(L, 128), _round_up(O, 128))  # lane-dense slab width

    # ---- pack all parameters into one slab (one DMA instead of five) --------
    # Fold sigmoid(z) = 0.5*(tanh(z/2)+1): pre-scale i/f/o gate columns by 0.5.
    col_scale = jnp.concatenate([
        jnp.full((2 * H,), 0.5, jnp.float32),   # i, f
        jnp.ones((H,), jnp.float32),            # g
        jnp.full((H,), 0.5, jnp.float32),       # o
    ])
    wih_t = weight_ih.T.astype(jnp.float32) * col_scale[None, :]   # (I, 4H)
    whh_t = weight_hh.T.astype(jnp.float32) * col_scale[None, :]   # (H, 4H)
    bias = (bias_ih + bias_hh).astype(jnp.float32) * col_scale     # (4H,)
    wlin_t = lin_w.T.astype(jnp.float32)                           # (H, O)
    blin = lin_b.astype(jnp.float32)                               # (O,)

    def pad(a, rows):
        out = jnp.zeros((rows, width), jnp.float32)
        return out.at[:a.shape[0], :a.shape[1]].set(a)

    off_whh = _round8(I)
    off_bias = off_whh + _round8(H)
    off_wlin = off_bias + 8
    off_blin = off_wlin + _round8(H)

    params = jnp.concatenate([
        pad(wih_t, _round8(I)),
        pad(whh_t, _round8(H)),
        pad(bias[None, :], 8),
        pad(wlin_t, _round8(H)),
        pad(blin[None, :], 8),
    ], axis=0)                                                     # (rows, width)

    # Time-major 2-D input: per-step rows are contiguous inside the kernel.
    x_tm = jnp.transpose(x, (1, 0, 2)).reshape(T * B, I).astype(jnp.float32)

    kernel = functools.partial(
        lstm_linear_relu_kernel, B=B, T=T, I=I, H=H,
        off_whh=off_whh, off_bias=off_bias, off_wlin=off_wlin, off_blin=off_blin)

    # Grid-less single-shot call: whole problem resident in VMEM, no pipeline
    # bookkeeping / double buffering.
    y = pl.pallas_call(
        kernel,
        out_shape=jax.ShapeDtypeStruct((T * B, width), jnp.float32),
    )(x_tm, params)

    # Un-pad / un-flatten in the wrapper (free layout plumbing).
    return jnp.transpose(y[:, :O].reshape(T, B, O), (1, 0, 2))


def reference_forward(x, weight_ih, weight_hh, bias_ih, bias_hh, lin_w, lin_b):
    """Pure-JAX reference (same math as torch.nn.LSTM + Linear + ReLU)."""
    B, T, I = x.shape
    H = weight_hh.shape[1]
    wih_t = weight_ih.T
    whh_t = weight_hh.T
    bias = bias_ih + bias_hh

    def step(carry, x_t):
        h, c = carry
        g = x_t @ wih_t + h @ whh_t + bias
        i = jax.nn.sigmoid(g[:, 0 * H:1 * H])
        f = jax.nn.sigmoid(g[:, 1 * H:2 * H])
        gg = jnp.tanh(g[:, 2 * H:3 * H])
        o = jax.nn.sigmoid(g[:, 3 * H:4 * H])
        c = f * c + i * gg
        h = o * jnp.tanh(c)
        return (h, c), h

    h0 = jnp.zeros((B, H), jnp.float32)
    c0 = jnp.zeros((B, H), jnp.float32)
    _, hs = jax.lax.scan(step, (h0, c0), jnp.transpose(x, (1, 0, 2)))
    out = jnp.transpose(hs, (1, 0, 2)) @ lin_w.T + lin_b
    return jnp.maximum(out, 0.0)


if __name__ == "__main__":
    # args.input_L_size=4, args.hidden_L_size=32, args.out_L_size=16 (synthetic)
    B, T = 2, 8
    I, H, O = 4, 32, 16

    key = jax.random.PRNGKey(0)
    ks = jax.random.split(key, 7)
    scale = 1.0 / jnp.sqrt(jnp.float32(H))  # matches PyTorch uniform bound

    weight_ih = jax.random.uniform(ks[0], (4 * H, I), jnp.float32, -scale, scale)
    weight_hh = jax.random.uniform(ks[1], (4 * H, H), jnp.float32, -scale, scale)
    bias_ih = jax.random.uniform(ks[2], (4 * H,), jnp.float32, -scale, scale)
    bias_hh = jax.random.uniform(ks[3], (4 * H,), jnp.float32, -scale, scale)
    lin_w = jax.random.uniform(ks[4], (O, H), jnp.float32, -scale, scale)
    lin_b = jax.random.uniform(ks[5], (O,), jnp.float32, -scale, scale)

    x = jax.random.normal(ks[6], (B, T, I), jnp.float32)  # batch_first, like nn.LSTM

    out = leadtime_lstm_forward(x, weight_ih, weight_hh, bias_ih, bias_hh, lin_w, lin_b)
    out = jax.block_until_ready(out)

    ref = reference_forward(x, weight_ih, weight_hh, bias_ih, bias_hh, lin_w, lin_b)
    assert out.shape == (B, T, O)
    assert jnp.allclose(out, ref, atol=1e-4, rtol=1e-4), "mismatch vs reference"

    print("KERNEL_OK")
</pallas_src>

<mosaic_0001>
module attributes {stable_mosaic.version = 11 : i64} {
  func.func @lstm_linear_relu_kernel(%arg0: memref<16x4xf32, #tpu.memory_space<vmem>>, %arg1: memref<88x128xf32, #tpu.memory_space<vmem>>, %arg2: memref<16x128xf32, #tpu.memory_space<vmem>>) attributes {dimension_semantics = [], scalar_prefetch = 0 : i64, scratch_operands = 0 : i64, tpu.core_type = #tpu.core_type<tc>} {
    %c0 = arith.constant 0 : index
    %c0_0 = arith.constant 0 : index
    %0 = vector.load %arg1[%c0, %c0_0] : memref<88x128xf32, #tpu.memory_space<vmem>>, vector<4x128xf32>
    %c8 = arith.constant 8 : index
    %c0_1 = arith.constant 0 : index
    %1 = vector.load %arg1[%c8, %c0_1] : memref<88x128xf32, #tpu.memory_space<vmem>>, vector<32x128xf32>
    %c40 = arith.constant 40 : index
    %c0_2 = arith.constant 0 : index
    %2 = vector.load %arg1[%c40, %c0_2] : memref<88x128xf32, #tpu.memory_space<vmem>>, vector<1x128xf32>
    %c48 = arith.constant 48 : index
    %c0_3 = arith.constant 0 : index
    %3 = vector.load %arg1[%c48, %c0_3] : memref<88x128xf32, #tpu.memory_space<vmem>>, vector<32x128xf32>
    %c80 = arith.constant 80 : index
    %c0_4 = arith.constant 0 : index
    %4 = vector.load %arg1[%c80, %c0_4] : memref<88x128xf32, #tpu.memory_space<vmem>>, vector<1x128xf32>
    %c0_5 = arith.constant 0 : index
    %c0_6 = arith.constant 0 : index
    %5 = vector.load %arg0[%c0_5, %c0_6] : memref<16x4xf32, #tpu.memory_space<vmem>>, vector<16x4xf32>
    %cst = arith.constant dense<0.000000e+00> : vector<16x128xf32>
    %6 = tpu.matmul %5, %0, %cst {dimension_numbers = #tpu.dot_dimension_numbers<[1], [0], [0], [1], [0, 0, 1, 1], [], []>} : vector<16x4xf32>, vector<4x128xf32>, vector<16x128xf32> -> vector<16x128xf32>
    %7 = vector.broadcast %2 : vector<1x128xf32> to vector<16x128xf32>
    %8 = arith.addf %6, %7 : vector<16x128xf32>
    %cst_7 = arith.constant 0.000000e+00 : f32
    %9 = vector.broadcast %cst_7 : f32 to vector<2x32xf32>
    %cst_8 = arith.constant 0.000000e+00 : f32
    %10 = vector.broadcast %cst_8 : f32 to vector<2x32xf32>
    %11 = vector.extract_strided_slice %8 {offsets = [0, 0], sizes = [2, 128], strides = [1, 1]} : vector<16x128xf32> to vector<2x128xf32>
    %cst_9 = arith.constant dense<0.000000e+00> : vector<2x128xf32>
    %12 = tpu.matmul %9, %1, %cst_9 {dimension_numbers = #tpu.dot_dimension_numbers<[1], [0], [0], [1], [0, 0, 1, 1], [], []>} : vector<2x32xf32>, vector<32x128xf32>, vector<2x128xf32> -> vector<2x128xf32>
    %13 = arith.addf %11, %12 : vector<2x128xf32>
    %14 = math.tanh %13 : vector<2x128xf32>
    %15 = vector.extract_strided_slice %14 {offsets = [0, 0], sizes = [2, 32], strides = [1, 1]} : vector<2x128xf32> to vector<2x32xf32>
    %cst_10 = arith.constant 1.000000e+00 : f32
    %16 = vector.broadcast %cst_10 : f32 to vector<2x32xf32>
    %17 = arith.addf %15, %16 : vector<2x32xf32>
    %cst_11 = arith.constant 5.000000e-01 : f32
    %18 = vector.broadcast %cst_11 : f32 to vector<2x32xf32>
    %19 = arith.mulf %18, %17 : vector<2x32xf32>
    %20 = vector.extract_strided_slice %14 {offsets = [0, 32], sizes = [2, 32], strides = [1, 1]} : vector<2x128xf32> to vector<2x32xf32>
    %cst_12 = arith.constant 1.000000e+00 : f32
    %21 = vector.broadcast %cst_12 : f32 to vector<2x32xf32>
    %22 = arith.addf %20, %21 : vector<2x32xf32>
    %cst_13 = arith.constant 5.000000e-01 : f32
    %23 = vector.broadcast %cst_13 : f32 to vector<2x32xf32>
    %24 = arith.mulf %23, %22 : vector<2x32xf32>
    %25 = vector.extract_strided_slice %14 {offsets = [0, 64], sizes = [2, 32], strides = [1, 1]} : vector<2x128xf32> to vector<2x32xf32>
    %26 = vector.extract_strided_slice %14 {offsets = [0, 96], sizes = [2, 32], strides = [1, 1]} : vector<2x128xf32> to vector<2x32xf32>
    %cst_14 = arith.constant 1.000000e+00 : f32
    %27 = vector.broadcast %cst_14 : f32 to vector<2x32xf32>
    %28 = arith.addf %26, %27 : vector<2x32xf32>
    %cst_15 = arith.constant 5.000000e-01 : f32
    %29 = vector.broadcast %cst_15 : f32 to vector<2x32xf32>
    %30 = arith.mulf %29, %28 : vector<2x32xf32>
    %31 = arith.mulf %24, %10 : vector<2x32xf32>
    %32 = arith.mulf %19, %25 : vector<2x32xf32>
    %33 = arith.addf %31, %32 : vector<2x32xf32>
    %34 = math.tanh %33 : vector<2x32xf32>
    %35 = arith.mulf %30, %34 : vector<2x32xf32>
    %36 = vector.extract_strided_slice %8 {offsets = [2, 0], sizes = [2, 128], strides = [1, 1]} : vector<16x128xf32> to vector<2x128xf32>
    %cst_16 = arith.constant dense<0.000000e+00> : vector<2x128xf32>
    %37 = tpu.matmul %35, %1, %cst_16 {dimension_numbers = #tpu.dot_dimension_numbers<[1], [0], [0], [1], [0, 0, 1, 1], [], []>} : vector<2x32xf32>, vector<32x128xf32>, vector<2x128xf32> -> vector<2x128xf32>
    %38 = arith.addf %36, %37 : vector<2x128xf32>
    %39 = math.tanh %38 : vector<2x128xf32>
    %40 = vector.extract_strided_slice %39 {offsets = [0, 0], sizes = [2, 32], strides = [1, 1]} : vector<2x128xf32> to vector<2x32xf32>
    %cst_17 = arith.constant 1.000000e+00 : f32
    %41 = vector.broadcast %cst_17 : f32 to vector<2x32xf32>
    %42 = arith.addf %40, %41 : vector<2x32xf32>
    %cst_18 = arith.constant 5.000000e-01 : f32
    %43 = vector.broadcast %cst_18 : f32 to vector<2x32xf32>
    %44 = arith.mulf %43, %42 : vector<2x32xf32>
    %45 = vector.extract_strided_slice %39 {offsets = [0, 32], sizes = [2, 32], strides = [1, 1]} : vector<2x128xf32> to vector<2x32xf32>
    %cst_19 = arith.constant 1.000000e+00 : f32
    %46 = vector.broadcast %cst_19 : f32 to vector<2x32xf32>
    %47 = arith.addf %45, %46 : vector<2x32xf32>
    %cst_20 = arith.constant 5.000000e-01 : f32
    %48 = vector.broadcast %cst_20 : f32 to vector<2x32xf32>
    %49 = arith.mulf %48, %47 : vector<2x32xf32>
    %50 = vector.extract_strided_slice %39 {offsets = [0, 64], sizes = [2, 32], strides = [1, 1]} : vector<2x128xf32> to vector<2x32xf32>
    %51 = vector.extract_strided_slice %39 {offsets = [0, 96], sizes = [2, 32], strides = [1, 1]} : vector<2x128xf32> to vector<2x32xf32>
    %cst_21 = arith.constant 1.000000e+00 : f32
    %52 = vector.broadcast %cst_21 : f32 to vector<2x32xf32>
    %53 = arith.addf %51, %52 : vector<2x32xf32>
    %cst_22 = arith.constant 5.000000e-01 : f32
    %54 = vector.broadcast %cst_22 : f32 to vector<2x32xf32>
    %55 = arith.mulf %54, %53 : vector<2x32xf32>
    %56 = arith.mulf %49, %33 : vector<2x32xf32>
    %57 = arith.mulf %44, %50 : vector<2x32xf32>
    %58 = arith.addf %56, %57 : vector<2x32xf32>
    %59 = math.tanh %58 : vector<2x32xf32>
    %60 = arith.mulf %55, %59 : vector<2x32xf32>
    %61 = vector.extract_strided_slice %8 {offsets = [4, 0], sizes = [2, 128], strides = [1, 1]} : vector<16x128xf32> to vector<2x128xf32>
    %cst_23 = arith.constant dense<0.000000e+00> : vector<2x128xf32>
    %62 = tpu.matmul %60, %1, %cst_23 {dimension_numbers = #tpu.dot_dimension_numbers<[1], [0], [0], [1], [0, 0, 1, 1], [], []>} : vector<2x32xf32>, vector<32x128xf32>, vector<2x128xf32> -> vector<2x128xf32>
    %63 = arith.addf %61, %62 : vector<2x128xf32>
    %64 = math.tanh %63 : vector<2x128xf32>
    %65 = vector.extract_strided_slice %64 {offsets = [0, 0], sizes = [2, 32], strides = [1, 1]} : vector<2x128xf32> to vector<2x32xf32>
    %cst_24 = arith.constant 1.000000e+00 : f32
    %66 = vector.broadcast %cst_24 : f32 to vector<2x32xf32>
    %67 = arith.addf %65, %66 : vector<2x32xf32>
    %cst_25 = arith.constant 5.000000e-01 : f32
    %68 = vector.broadcast %cst_25 : f32 to vector<2x32xf32>
    %69 = arith.mulf %68, %67 : vector<2x32xf32>
    %70 = vector.extract_strided_slice %64 {offsets = [0, 32], sizes = [2, 32], strides = [1, 1]} : vector<2x128xf32> to vector<2x32xf32>
    %cst_26 = arith.constant 1.000000e+00 : f32
    %71 = vector.broadcast %cst_26 : f32 to vector<2x32xf32>
    %72 = arith.addf %70, %71 : vector<2x32xf32>
    %cst_27 = arith.constant 5.000000e-01 : f32
    %73 = vector.broadcast %cst_27 : f32 to vector<2x32xf32>
    %74 = arith.mulf %73, %72 : vector<2x32xf32>
    %75 = vector.extract_strided_slice %64 {offsets = [0, 64], sizes = [2, 32], strides = [1, 1]} : vector<2x128xf32> to vector<2x32xf32>
    %76 = vector.extract_strided_slice %64 {offsets = [0, 96], sizes = [2, 32], strides = [1, 1]} : vector<2x128xf32> to vector<2x32xf32>
    %cst_28 = arith.constant 1.000000e+00 : f32
    %77 = vector.broadcast %cst_28 : f32 to vector<2x32xf32>
    %78 = arith.addf %76, %77 : vector<2x32xf32>
    %cst_29 = arith.constant 5.000000e-01 : f32
    %79 = vector.broadcast %cst_29 : f32 to vector<2x32xf32>
    %80 = arith.mulf %79, %78 : vector<2x32xf32>
    %81 = arith.mulf %74, %58 : vector<2x32xf32>
    %82 = arith.mulf %69, %75 : vector<2x32xf32>
    %83 = arith.addf %81, %82 : vector<2x32xf32>
    %84 = math.tanh %83 : vector<2x32xf32>
    %85 = arith.mulf %80, %84 : vector<2x32xf32>
    %86 = vector.extract_strided_slice %8 {offsets = [6, 0], sizes = [2, 128], strides = [1, 1]} : vector<16x128xf32> to vector<2x128xf32>
    %cst_30 = arith.constant dense<0.000000e+00> : vector<2x128xf32>
    %87 = tpu.matmul %85, %1, %cst_30 {dimension_numbers = #tpu.dot_dimension_numbers<[1], [0], [0], [1], [0, 0, 1, 1], [], []>} : vector<2x32xf32>, vector<32x128xf32>, vector<2x128xf32> -> vector<2x128xf32>
    %88 = arith.addf %86, %87 : vector<2x128xf32>
    %89 = math.tanh %88 : vector<2x128xf32>
    %90 = vector.extract_strided_slice %89 {offsets = [0, 0], sizes = [2, 32], strides = [1, 1]} : vector<2x128xf32> to vector<2x32xf32>
    %cst_31 = arith.constant 1.000000e+00 : f32
    %91 = vector.broadcast %cst_31 : f32 to vector<2x32xf32>
    %92 = arith.addf %90, %91 : vector<2x32xf32>
    %cst_32 = arith.constant 5.000000e-01 : f32
    %93 = vector.broadcast %cst_32 : f32 to vector<2x32xf32>
    %94 = arith.mulf %93, %92 : vector<2x32xf32>
    %95 = vector.extract_strided_slice %89 {offsets = [0, 32], sizes = [2, 32], strides = [1, 1]} : vector<2x128xf32> to vector<2x32xf32>
    %cst_33 = arith.constant 1.000000e+00 : f32
    %96 = vector.broadcast %cst_33 : f32 to vector<2x32xf32>
    %97 = arith.addf %95, %96 : vector<2x32xf32>
    %cst_34 = arith.constant 5.000000e-01 : f32
    %98 = vector.broadcast %cst_34 : f32 to vector<2x32xf32>
    %99 = arith.mulf %98, %97 : vector<2x32xf32>
    %100 = vector.extract_strided_slice %89 {offsets = [0, 64], sizes = [2, 32], strides = [1, 1]} : vector<2x128xf32> to vector<2x32xf32>
    %101 = vector.extract_strided_slice %89 {offsets = [0, 96], sizes = [2, 32], strides = [1, 1]} : vector<2x128xf32> to vector<2x32xf32>
    %cst_35 = arith.constant 1.000000e+00 : f32
    %102 = vector.broadcast %cst_35 : f32 to vector<2x32xf32>
    %103 = arith.addf %101, %102 : vector<2x32xf32>
    %cst_36 = arith.constant 5.000000e-01 : f32
    %104 = vector.broadcast %cst_36 : f32 to vector<2x32xf32>
    %105 = arith.mulf %104, %103 : vector<2x32xf32>
    %106 = arith.mulf %99, %83 : vector<2x32xf32>
    %107 = arith.mulf %94, %100 : vector<2x32xf32>
    %108 = arith.addf %106, %107 : vector<2x32xf32>
    %109 = math.tanh %108 : vector<2x32xf32>
    %110 = arith.mulf %105, %109 : vector<2x32xf32>
    %111 = vector.extract_strided_slice %8 {offsets = [8, 0], sizes = [2, 128], strides = [1, 1]} : vector<16x128xf32> to vector<2x128xf32>
    %cst_37 = arith.constant dense<0.000000e+00> : vector<2x128xf32>
    %112 = tpu.matmul %110, %1, %cst_37 {dimension_numbers = #tpu.dot_dimension_numbers<[1], [0], [0], [1], [0, 0, 1, 1], [], []>} : vector<2x32xf32>, vector<32x128xf32>, vector<2x128xf32> -> vector<2x128xf32>
    %113 = arith.addf %111, %112 : vector<2x128xf32>
    %114 = math.tanh %113 : vector<2x128xf32>
    %115 = vector.extract_strided_slice %114 {offsets = [0, 0], sizes = [2, 32], strides = [1, 1]} : vector<2x128xf32> to vector<2x32xf32>
    %cst_38 = arith.constant 1.000000e+00 : f32
    %116 = vector.broadcast %cst_38 : f32 to vector<2x32xf32>
    %117 = arith.addf %115, %116 : vector<2x32xf32>
    %cst_39 = arith.constant 5.000000e-01 : f32
    %118 = vector.broadcast %cst_39 : f32 to vector<2x32xf32>
    %119 = arith.mulf %118, %117 : vector<2x32xf32>
    %120 = vector.extract_strided_slice %114 {offsets = [0, 32], sizes = [2, 32], strides = [1, 1]} : vector<2x128xf32> to vector<2x32xf32>
    %cst_40 = arith.constant 1.000000e+00 : f32
    %121 = vector.broadcast %cst_40 : f32 to vector<2x32xf32>
    %122 = arith.addf %120, %121 : vector<2x32xf32>
    %cst_41 = arith.constant 5.000000e-01 : f32
    %123 = vector.broadcast %cst_41 : f32 to vector<2x32xf32>
    %124 = arith.mulf %123, %122 : vector<2x32xf32>
    %125 = vector.extract_strided_slice %114 {offsets = [0, 64], sizes = [2, 32], strides = [1, 1]} : vector<2x128xf32> to vector<2x32xf32>
    %126 = vector.extract_strided_slice %114 {offsets = [0, 96], sizes = [2, 32], strides = [1, 1]} : vector<2x128xf32> to vector<2x32xf32>
    %cst_42 = arith.constant 1.000000e+00 : f32
    %127 = vector.broadcast %cst_42 : f32 to vector<2x32xf32>
    %128 = arith.addf %126, %127 : vector<2x32xf32>
    %cst_43 = arith.constant 5.000000e-01 : f32
    %129 = vector.broadcast %cst_43 : f32 to vector<2x32xf32>
    %130 = arith.mulf %129, %128 : vector<2x32xf32>
    %131 = arith.mulf %124, %108 : vector<2x32xf32>
    %132 = arith.mulf %119, %125 : vector<2x32xf32>
    %133 = arith.addf %131, %132 : vector<2x32xf32>
    %134 = math.tanh %133 : vector<2x32xf32>
    %135 = arith.mulf %130, %134 : vector<2x32xf32>
    %136 = vector.extract_strided_slice %8 {offsets = [10, 0], sizes = [2, 128], strides = [1, 1]} : vector<16x128xf32> to vector<2x128xf32>
    %cst_44 = arith.constant dense<0.000000e+00> : vector<2x128xf32>
    %137 = tpu.matmul %135, %1, %cst_44 {dimension_numbers = #tpu.dot_dimension_numbers<[1], [0], [0], [1], [0, 0, 1, 1], [], []>} : vector<2x32xf32>, vector<32x128xf32>, vector<2x128xf32> -> vector<2x128xf32>
    %138 = arith.addf %136, %137 : vector<2x128xf32>
    %139 = math.tanh %138 : vector<2x128xf32>
    %140 = vector.extract_strided_slice %139 {offsets = [0, 0], sizes = [2, 32], strides = [1, 1]} : vector<2x128xf32> to vector<2x32xf32>
    %cst_45 = arith.constant 1.000000e+00 : f32
    %141 = vector.broadcast %cst_45 : f32 to vector<2x32xf32>
    %142 = arith.addf %140, %141 : vector<2x32xf32>
    %cst_46 = arith.constant 5.000000e-01 : f32
    %143 = vector.broadcast %cst_46 : f32 to vector<2x32xf32>
    %144 = arith.mulf %143, %142 : vector<2x32xf32>
    %145 = vector.extract_strided_slice %139 {offsets = [0, 32], sizes = [2, 32], strides = [1, 1]} : vector<2x128xf32> to vector<2x32xf32>
    %cst_47 = arith.constant 1.000000e+00 : f32
    %146 = vector.broadcast %cst_47 : f32 to vector<2x32xf32>
    %147 = arith.addf %145, %146 : vector<2x32xf32>
    %cst_48 = arith.constant 5.000000e-01 : f32
    %148 = vector.broadcast %cst_48 : f32 to vector<2x32xf32>
    %149 = arith.mulf %148, %147 : vector<2x32xf32>
    %150 = vector.extract_strided_slice %139 {offsets = [0, 64], sizes = [2, 32], strides = [1, 1]} : vector<2x128xf32> to vector<2x32xf32>
    %151 = vector.extract_strided_slice %139 {offsets = [0, 96], sizes = [2, 32], strides = [1, 1]} : vector<2x128xf32> to vector<2x32xf32>
    %cst_49 = arith.constant 1.000000e+00 : f32
    %152 = vector.broadcast %cst_49 : f32 to vector<2x32xf32>
    %153 = arith.addf %151, %152 : vector<2x32xf32>
    %cst_50 = arith.constant 5.000000e-01 : f32
    %154 = vector.broadcast %cst_50 : f32 to vector<2x32xf32>
    %155 = arith.mulf %154, %153 : vector<2x32xf32>
    %156 = arith.mulf %149, %133 : vector<2x32xf32>
    %157 = arith.mulf %144, %150 : vector<2x32xf32>
    %158 = arith.addf %156, %157 : vector<2x32xf32>
    %159 = math.tanh %158 : vector<2x32xf32>
    %160 = arith.mulf %155, %159 : vector<2x32xf32>
    %161 = vector.extract_strided_slice %8 {offsets = [12, 0], sizes = [2, 128], strides = [1, 1]} : vector<16x128xf32> to vector<2x128xf32>
    %cst_51 = arith.constant dense<0.000000e+00> : vector<2x128xf32>
    %162 = tpu.matmul %160, %1, %cst_51 {dimension_numbers = #tpu.dot_dimension_numbers<[1], [0], [0], [1], [0, 0, 1, 1], [], []>} : vector<2x32xf32>, vector<32x128xf32>, vector<2x128xf32> -> vector<2x128xf32>
    %163 = arith.addf %161, %162 : vector<2x128xf32>
    %164 = math.tanh %163 : vector<2x128xf32>
    %165 = vector.extract_strided_slice %164 {offsets = [0, 0], sizes = [2, 32], strides = [1, 1]} : vector<2x128xf32> to vector<2x32xf32>
    %cst_52 = arith.constant 1.000000e+00 : f32
    %166 = vector.broadcast %cst_52 : f32 to vector<2x32xf32>
    %167 = arith.addf %165, %166 : vector<2x32xf32>
    %cst_53 = arith.constant 5.000000e-01 : f32
    %168 = vector.broadcast %cst_53 : f32 to vector<2x32xf32>
    %169 = arith.mulf %168, %167 : vector<2x32xf32>
    %170 = vector.extract_strided_slice %164 {offsets = [0, 32], sizes = [2, 32], strides = [1, 1]} : vector<2x128xf32> to vector<2x32xf32>
    %cst_54 = arith.constant 1.000000e+00 : f32
    %171 = vector.broadcast %cst_54 : f32 to vector<2x32xf32>
    %172 = arith.addf %170, %171 : vector<2x32xf32>
    %cst_55 = arith.constant 5.000000e-01 : f32
    %173 = vector.broadcast %cst_55 : f32 to vector<2x32xf32>
    %174 = arith.mulf %173, %172 : vector<2x32xf32>
    %175 = vector.extract_strided_slice %164 {offsets = [0, 64], sizes = [2, 32], strides = [1, 1]} : vector<2x128xf32> to vector<2x32xf32>
    %176 = vector.extract_strided_slice %164 {offsets = [0, 96], sizes = [2, 32], strides = [1, 1]} : vector<2x128xf32> to vector<2x32xf32>
    %cst_56 = arith.constant 1.000000e+00 : f32
    %177 = vector.broadcast %cst_56 : f32 to vector<2x32xf32>
    %178 = arith.addf %176, %177 : vector<2x32xf32>
    %cst_57 = arith.constant 5.000000e-01 : f32
    %179 = vector.broadcast %cst_57 : f32 to vector<2x32xf32>
    %180 = arith.mulf %179, %178 : vector<2x32xf32>
    %181 = arith.mulf %174, %158 : vector<2x32xf32>
    %182 = arith.mulf %169, %175 : vector<2x32xf32>
    %183 = arith.addf %181, %182 : vector<2x32xf32>
    %184 = math.tanh %183 : vector<2x32xf32>
    %185 = arith.mulf %180, %184 : vector<2x32xf32>
    %186 = vector.extract_strided_slice %8 {offsets = [14, 0], sizes = [2, 128], strides = [1, 1]} : vector<16x128xf32> to vector<2x128xf32>
    %cst_58 = arith.constant dense<0.000000e+00> : vector<2x128xf32>
    %187 = tpu.matmul %185, %1, %cst_58 {dimension_numbers = #tpu.dot_dimension_numbers<[1], [0], [0], [1], [0, 0, 1, 1], [], []>} : vector<2x32xf32>, vector<32x128xf32>, vector<2x128xf32> -> vector<2x128xf32>
    %188 = arith.addf %186, %187 : vector<2x128xf32>
    %189 = math.tanh %188 : vector<2x128xf32>
    %190 = vector.extract_strided_slice %189 {offsets = [0, 0], sizes = [2, 32], strides = [1, 1]} : vector<2x128xf32> to vector<2x32xf32>
    %cst_59 = arith.constant 1.000000e+00 : f32
    %191 = vector.broadcast %cst_59 : f32 to vector<2x32xf32>
    %192 = arith.addf %190, %191 : vector<2x32xf32>
    %cst_60 = arith.constant 5.000000e-01 : f32
    %193 = vector.broadcast %cst_60 : f32 to vector<2x32xf32>
    %194 = arith.mulf %193, %192 : vector<2x32xf32>
    %195 = vector.extract_strided_slice %189 {offsets = [0, 32], sizes = [2, 32], strides = [1, 1]} : vector<2x128xf32> to vector<2x32xf32>
    %cst_61 = arith.constant 1.000000e+00 : f32
    %196 = vector.broadcast %cst_61 : f32 to vector<2x32xf32>
    %197 = arith.addf %195, %196 : vector<2x32xf32>
    %cst_62 = arith.constant 5.000000e-01 : f32
    %198 = vector.broadcast %cst_62 : f32 to vector<2x32xf32>
    %199 = arith.mulf %198, %197 : vector<2x32xf32>
    %200 = vector.extract_strided_slice %189 {offsets = [0, 64], sizes = [2, 32], strides = [1, 1]} : vector<2x128xf32> to vector<2x32xf32>
    %201 = vector.extract_strided_slice %189 {offsets = [0, 96], sizes = [2, 32], strides = [1, 1]} : vector<2x128xf32> to vector<2x32xf32>
    %cst_63 = arith.constant 1.000000e+00 : f32
    %202 = vector.broadcast %cst_63 : f32 to vector<2x32xf32>
    %203 = arith.addf %201, %202 : vector<2x32xf32>
    %cst_64 = arith.constant 5.000000e-01 : f32
    %204 = vector.broadcast %cst_64 : f32 to vector<2x32xf32>
    %205 = arith.mulf %204, %203 : vector<2x32xf32>
    %206 = arith.mulf %199, %183 : vector<2x32xf32>
    %207 = arith.mulf %194, %200 : vector<2x32xf32>
    %208 = arith.addf %206, %207 : vector<2x32xf32>
    %209 = math.tanh %208 : vector<2x32xf32>
    %210 = arith.mulf %205, %209 : vector<2x32xf32>
    %211 = tpu.concatenate %35, %60, %85, %110, %135, %160, %185, %210 in 0 : vector<2x32xf32>, vector<2x32xf32>, vector<2x32xf32>, vector<2x32xf32>, vector<2x32xf32>, vector<2x32xf32>, vector<2x32xf32>, vector<2x32xf32> -> vector<16x32xf32>
    %cst_65 = arith.constant dense<0.000000e+00> : vector<16x128xf32>
    %212 = tpu.matmul %211, %3, %cst_65 {dimension_numbers = #tpu.dot_dimension_numbers<[1], [0], [0], [1], [0, 0, 1, 1], [], []>} : vector<16x32xf32>, vector<32x128xf32>, vector<16x128xf32> -> vector<16x128xf32>
    %213 = vector.broadcast %4 : vector<1x128xf32> to vector<16x128xf32>
    %214 = arith.addf %212, %213 : vector<16x128xf32>
    %cst_66 = arith.constant 0.000000e+00 : f32
    %215 = vector.broadcast %cst_66 : f32 to vector<16x128xf32>
    %216 = arith.maximumf %214, %215 : vector<16x128xf32>
    %c0_67 = arith.constant 0 : index
    %c0_68 = arith.constant 0 : index
    %217 = vector.load %arg2[%c0_67, %c0_68] : memref<16x128xf32, #tpu.memory_space<vmem>>, vector<16x128xf32>
    tpu.vector_store %arg2[%c0_67, %c0_68], %216 {strides = array<i32>} : memref<16x128xf32, #tpu.memory_space<vmem>>, vector<16x128xf32>,
    return
  }
}

</mosaic_0001>

<llo_original>
// kernel: tpu_custom_call.1
$region0: #{tpu_custom_call.1}
  #allocation0 [shape = 'u32[]', space=smem, size = 0x4, offset = 0x4, fixed_abs, tag = 'smem constant byte address 0x4 - core index']
  #allocation1 [shape = 'u32[144,128]{1,0:T(1,128)}', space=vmem, size = 0x12000, scoped, tag = 'internal scratch']
  %s0 = inlined_call_operand.vmem [shape: f32[16,4], index: 0, kind: input, shape index: {}]
  %s1 = inlined_call_operand.hbm [shape: f32[88,128], index: 1, kind: input, shape index: {}]
  %s2 = inlined_call_operand.hbm [shape: f32[16,128], index: 2, kind: output, shape index: {}]
  %s3 = sld [smem:[#allocation0]]
  $region22: #{tpu_custom_call.1} parent=0
    _
  %s5 = ssub.s32 1, %s3
  %s6 = scalar_select 0, %s5, %s3
  $region1: #{tpu_custom_call.1} parent=0
    #allocation2 [shape = 'u8[45056]{0}', space=vmem, size = 0xb000, scoped, tag = 'input window, operand 1, single buffered']
    #allocation3 [shape = 's32[1]{0}', space=sflag, size = 0x4, scoped, tag = 'scoped memory for tpu_custom_call.1']
    #allocation4 [shape = 's32[1]{0}', space=sflag, size = 0x4, scoped, tag = 'scoped memory for tpu_custom_call.1']
    #allocation5 [shape = 'u8[8192]{0}', space=vmem, size = 0x2000, scoped, tag = 'output window, operand 0, single buffered']
    %7 = vsyncpa [#allocation3], 0
    %8 = vsyncpa [#allocation4], 0
    // Predicated region
    $region2: #{tpu_custom_call.1} parent=1 // pred_check
      _
    $region3: #{tpu_custom_call.1} parent=1 // pred_check_branch
      %10 = sbr.rel (0) target = $region5
    $region4: #{tpu_custom_call.1} parent=1 // pred_region
      _
    $region5: #{tpu_custom_call.1} parent=1 // pred_fallthru
      _
    // Predicated region
    $region6: #{tpu_custom_call.1} parent=1 // pred_check
      _
    $region7: #{tpu_custom_call.1} parent=1 // pred_check_branch
      %12 = sbr.rel (0) target = $region9
    $region8: #{tpu_custom_call.1} parent=1 // pred_region
      %s14 = ssub.s32 1408, 1408
      %15 = vsyncadd [#allocation3], %s14
      %s16 = sshll.u32 [#allocation2], 4
      %s17 = int_to_ptr.vmem [resolvable:$true] %s16
      %22 = dma.hbm_to_vmem [thread:$0]  %s1, 1408, %s17, [#allocation3], 128, 128, 8
    $region9: #{tpu_custom_call.1} parent=1 // pred_fallthru
      _
    // Predicated region
    $region10: #{tpu_custom_call.1} parent=1 // pred_check
      _
    $region11: #{tpu_custom_call.1} parent=1 // pred_check_branch
      %24 = sbr.rel (0) target = $region13
    $region12: #{tpu_custom_call.1} parent=1 // pred_region
      %25 = dma.done [#allocation3], 1408
    $region13: #{tpu_custom_call.1} parent=1 // pred_fallthru
      _
    %v26 = vld [vmem:[#allocation2] sm:$0xf]
    %v27 = vld [vmem:[#allocation2 + $0x8] sm:$0xff]
    %v28 = vld [vmem:[#allocation2 + $0x10] sm:$0xff]
    %v29 = vld [vmem:[#allocation2 + $0x18] sm:$0xff]
    %v30 = vld [vmem:[#allocation2 + $0x20] sm:$0xff]
    %v31 = vld [vmem:[#allocation2 + $0x28] sm:$0x1]
    %v32 = vld [vmem:[#allocation2 + $0x30] sm:$0xff]
    %v33 = vld [vmem:[#allocation2 + $0x38] sm:$0xff]
    %v34 = vld [vmem:[#allocation2 + $0x40] sm:$0xff]
    %v35 = vld [vmem:[#allocation2 + $0x48] sm:$0xff]
    %v36 = vld [vmem:[#allocation2 + $0x50] sm:$0x1]
    %v37 = vld [vmem:[%s0] sm:$0xff]
    %v38 = vld [vmem:[%s0 + $0x8] sm:$0xff]
    %v39 = vlaneseq
    %v40 = vshrl.u32 %v39, 7
    %v41 = vsub.s32 0, %v40
    %v42 = vrot.slane %v31, %v41
    %vm43 = vcmask 31744
    %v45 = vsel %vm43, %v37, 0
    %v48 = vsel %vm43, %v38, 0
    %vm50 = vcmask 1043456
    %v52 = vsel %vm50, %v26, 0
    %54 = vmatprep.subr.mxu0 0.0
    %55 = vmatpush1.msra.mxu0 %v52
    %56 = vmatprep.subr.mxu0 0.0
    %57 = vmatpush1.msra.mxu0 0.0
    %58 = vmatprep.subr.mxu0 0.0
    %59 = vmatpush1.msra.mxu0 0.0
    %60 = vmatprep.subr.mxu0 0.0
    %61 = vmatpush1.msra.mxu0 0.0
    %62 = vmatprep.subr.mxu0 0.0
    %63 = vmatpush1.msra.mxu0 0.0
    %64 = vmatprep.subr.mxu0 0.0
    %65 = vmatpush1.msra.mxu0 0.0
    %66 = vmatprep.subr.mxu0 0.0
    %67 = vmatpush1.msra.mxu0 0.0
    %68 = vmatprep.subr.mxu0 0.0
    %69 = vmatpush1.msra.mxu0 0.0
    %70 = vmatprep.subr.mxu0 0.0
    %71 = vmatpush1.msra.mxu0 0.0
    %72 = vmatprep.subr.mxu0 0.0
    %73 = vmatpush1.msra.mxu0 0.0
    %74 = vmatprep.subr.mxu0 0.0
    %75 = vmatpush1.msra.mxu0 0.0
    %76 = vmatprep.subr.mxu0 0.0
    %77 = vmatpush1.msra.mxu0 0.0
    %78 = vmatprep.subr.mxu0 0.0
    %79 = vmatpush1.msra.mxu0 0.0
    %80 = vmatprep.subr.mxu0 0.0
    %81 = vmatpush1.msra.mxu0 0.0
    %82 = vmatprep.subr.mxu0 0.0
    %83 = vmatpush1.msra.mxu0 0.0
    %84 = vmatprep.subr.mxu0 0.0
    %85 = vmatpush1.msra.mxu0 0.0
    %86 = vmatprep.subr.mxu0 0.0
    %87 = vmatpush1.msra.mxu0 0.0
    %88 = vmatprep.subr.mxu0 0.0
    %89 = vmatpush1.msra.mxu0 0.0
    %90 = vmatprep.subr.mxu0 0.0
    %91 = vmatpush1.msra.mxu0 0.0
    %92 = vmatprep.subr.mxu0 0.0
    %93 = vmatpush1.msra.mxu0 0.0
    %94 = vmatprep.subr.mxu0 0.0
    %95 = vmatpush1.msra.mxu0 0.0
    %96 = vmatprep.subr.mxu0 0.0
    %97 = vmatpush1.msra.mxu0 0.0
    %98 = vmatprep.subr.mxu0 0.0
    %99 = vmatpush1.msra.mxu0 0.0
    %100 = vmatprep.subr.mxu0 0.0
    %101 = vmatpush1.msra.mxu0 0.0
    %102 = vmatprep.subr.mxu0 0.0
    %103 = vmatpush1.msra.mxu0 0.0
    %104 = vmatprep.subr.mxu0 0.0
    %105 = vmatpush1.msra.mxu0 0.0
    %106 = vmatprep.subr.mxu0 0.0
    %107 = vmatpush1.msra.mxu0 0.0
    %108 = vmatprep.subr.mxu0 0.0
    %109 = vmatpush1.msra.mxu0 0.0
    %110 = vmatprep.subr.mxu0 0.0
    %111 = vmatpush1.msra.mxu0 0.0
    %112 = vmatprep.subr.mxu0 0.0
    %113 = vmatpush1.msra.mxu0 0.0
    %114 = vmatprep.subr.mxu0 0.0
    %115 = vmatpush1.msra.mxu0 0.0
    %116 = vmatprep.subr.mxu0 0.0
    %117 = vmatpush1.msra.mxu0 0.0
    %118 = vmatprep.mubr.f32.mxu0 0.0
    %119 = vmatmul.mubr.f32.gmra.mrb[0].mxu0 %v45
    %v120 = vpop.f32.mrb[0].mxu0
    %v121 = vadd.f32 %v42, %v120
    %v122 = vpop.f32.mrb[0].mxu0
    %123 = vmatprep.mubr.f32.mxu0 0.0
    %124 = vmatmul.mubr.f32.gmra.mrb[0].mxu0 %v48
    %v125 = vpop.f32.mrb[0].mxu0
    %v126 = vadd.f32 %v42, %v125
    %v127 = vpop.f32.mrb[0].mxu0
    %128 = vdwg.mxu0
    %vm129 = vcmask 261120
    %v131 = vsel %vm129, 0.0, 0
    %133 = vmatprep.subr.mxu0 0.0
    %134 = vmatpush1.msra.mxu0 %v27
    %135 = vmatprep.subr.mxu0 0.0
    %136 = vmatpush1.msra.mxu0 %v28
    %137 = vmatprep.subr.mxu0 0.0
    %138 = vmatpush1.msra.mxu0 %v29
    %139 = vmatprep.subr.mxu0 0.0
    %140 = vmatpush1.msra.mxu0 %v30
    %141 = vmatprep.subr.mxu0 0.0
    %142 = vmatpush1.msra.mxu0 0.0
    %143 = vmatprep.subr.mxu0 0.0
    %144 = vmatpush1.msra.mxu0 0.0
    %145 = vmatprep.subr.mxu0 0.0
    %146 = vmatpush1.msra.mxu0 0.0
    %147 = vmatprep.subr.mxu0 0.0
    %148 = vmatpush1.msra.mxu0 0.0
    %149 = vmatprep.subr.mxu0 0.0
    %150 = vmatpush1.msra.mxu0 0.0
    %151 = vmatprep.subr.mxu0 0.0
    %152 = vmatpush1.msra.mxu0 0.0
    %153 = vmatprep.subr.mxu0 0.0
    %154 = vmatpush1.msra.mxu0 0.0
    %155 = vmatprep.subr.mxu0 0.0
    %156 = vmatpush1.msra.mxu0 0.0
    %157 = vmatprep.subr.mxu0 0.0
    %158 = vmatpush1.msra.mxu0 0.0
    %159 = vmatprep.subr.mxu0 0.0
    %160 = vmatpush1.msra.mxu0 0.0
    %161 = vmatprep.subr.mxu0 0.0
    %162 = vmatpush1.msra.mxu0 0.0
    %163 = vmatprep.subr.mxu0 0.0
    %164 = vmatpush1.msra.mxu0 0.0
    %165 = vmatprep.subr.mxu0 0.0
    %166 = vmatpush1.msra.mxu0 0.0
    %167 = vmatprep.subr.mxu0 0.0
    %168 = vmatpush1.msra.mxu0 0.0
    %169 = vmatprep.subr.mxu0 0.0
    %170 = vmatpush1.msra.mxu0 0.0
    %171 = vmatprep.subr.mxu0 0.0
    %172 = vmatpush1.msra.mxu0 0.0
    %173 = vmatprep.subr.mxu0 0.0
    %174 = vmatpush1.msra.mxu0 0.0
    %175 = vmatprep.subr.mxu0 0.0
    %176 = vmatpush1.msra.mxu0 0.0
    %177 = vmatprep.subr.mxu0 0.0
    %178 = vmatpush1.msra.mxu0 0.0
    %179 = vmatprep.subr.mxu0 0.0
    %180 = vmatpush1.msra.mxu0 0.0
    %181 = vmatprep.subr.mxu0 0.0
    %182 = vmatpush1.msra.mxu0 0.0
    %183 = vmatprep.subr.mxu0 0.0
    %184 = vmatpush1.msra.mxu0 0.0
    %185 = vmatprep.subr.mxu0 0.0
    %186 = vmatpush1.msra.mxu0 0.0
    %187 = vmatprep.subr.mxu0 0.0
    %188 = vmatpush1.msra.mxu0 0.0
    %189 = vmatprep.subr.mxu0 0.0
    %190 = vmatpush1.msra.mxu0 0.0
    %191 = vmatprep.subr.mxu0 0.0
    %192 = vmatpush1.msra.mxu0 0.0
    %193 = vmatprep.subr.mxu0 0.0
    %194 = vmatpush1.msra.mxu0 0.0
    %195 = vmatprep.subr.mxu0 0.0
    %196 = vmatpush1.msra.mxu0 0.0
    %197 = vmatprep.mubr.f32.mxu0 0.0
    %198 = vmatmul.mubr.f32.gmra.mrb[0].mxu0 %v131
    %v199 = vpop.f32.mrb[0].mxu0
    %v200 = vadd.f32 0.0, %v199
    %v201 = vpop.f32.mrb[0].mxu0
    %202 = vdwg.mxu0
    %v203 = vadd.f32 %v121, %v200
    %v204 = vtanh.pop %v203
    %v205 = vadd.f32 %v204, 1.0
    %v206 = vmul.f32 %v205, 0.5
    %v207 = vmul.f32 %v206, 0.0
    %209 = vrot.lane.b32.xlu0 %v204, 64
    %v210 = vpop.permute.xlu0 %209
    %v212 = vmul.f32 %v206, %v210
    %214 = vrot.lane.b32.xlu0 %v212, 32
    %v215 = vpop.permute.xlu0 %214
    %v217 = vadd.f32 %v207, %v215
    %v218 = vtanh.pop %v217
    %220 = vrot.lane.b32.xlu0 %v218, 64
    %v221 = vpop.permute.xlu0 %220
    %v223 = vmul.f32 %v206, %v221
    %225 = vrot.lane.b32.xlu0 %v223, 32
    %v226 = vpop.permute.xlu0 %225
    %v227 = vsel %vm129, %v226, 0
    %229 = vmatprep.subr.mxu0 0.0
    %230 = vmatpush1.msra.mxu0 %v27
    %231 = vmatprep.subr.mxu0 0.0
    %232 = vmatpush1.msra.mxu0 %v28
    %233 = vmatprep.subr.mxu0 0.0
    %234 = vmatpush1.msra.mxu0 %v29
    %235 = vmatprep.subr.mxu0 0.0
    %236 = vmatpush1.msra.mxu0 %v30
    %237 = vmatprep.subr.mxu0 0.0
    %238 = vmatpush1.msra.mxu0 0.0
    %239 = vmatprep.subr.mxu0 0.0
    %240 = vmatpush1.msra.mxu0 0.0
    %241 = vmatprep.subr.mxu0 0.0
    %242 = vmatpush1.msra.mxu0 0.0
    %243 = vmatprep.subr.mxu0 0.0
    %244 = vmatpush1.msra.mxu0 0.0
    %245 = vmatprep.subr.mxu0 0.0
    %246 = vmatpush1.msra.mxu0 0.0
    %247 = vmatprep.subr.mxu0 0.0
    %248 = vmatpush1.msra.mxu0 0.0
    %249 = vmatprep.subr.mxu0 0.0
    %250 = vmatpush1.msra.mxu0 0.0
    %251 = vmatprep.subr.mxu0 0.0
    %252 = vmatpush1.msra.mxu0 0.0
    %253 = vmatprep.subr.mxu0 0.0
    %254 = vmatpush1.msra.mxu0 0.0
    %255 = vmatprep.subr.mxu0 0.0
    %256 = vmatpush1.msra.mxu0 0.0
    %257 = vmatprep.subr.mxu0 0.0
    %258 = vmatpush1.msra.mxu0 0.0
    %259 = vmatprep.subr.mxu0 0.0
    %260 = vmatpush1.msra.mxu0 0.0
    %261 = vmatprep.subr.mxu0 0.0
    %262 = vmatpush1.msra.mxu0 0.0
    %263 = vmatprep.subr.mxu0 0.0
    %264 = vmatpush1.msra.mxu0 0.0
    %265 = vmatprep.subr.mxu0 0.0
    %266 = vmatpush1.msra.mxu0 0.0
    %267 = vmatprep.subr.mxu0 0.0
    %268 = vmatpush1.msra.mxu0 0.0
    %269 = vmatprep.subr.mxu0 0.0
    %270 = vmatpush1.msra.mxu0 0.0
    %271 = vmatprep.subr.mxu0 0.0
    %272 = vmatpush1.msra.mxu0 0.0
    %273 = vmatprep.subr.mxu0 0.0
    %274 = vmatpush1.msra.mxu0 0.0
    %275 = vmatprep.subr.mxu0 0.0
    %276 = vmatpush1.msra.mxu0 0.0
    %277 = vmatprep.subr.mxu0 0.0
    %278 = vmatpush1.msra.mxu0 0.0
    %279 = vmatprep.subr.mxu0 0.0
    %280 = vmatpush1.msra.mxu0 0.0
    %281 = vmatprep.subr.mxu0 0.0
    %282 = vmatpush1.msra.mxu0 0.0
    %283 = vmatprep.subr.mxu0 0.0
    %284 = vmatpush1.msra.mxu0 0.0
    %285 = vmatprep.subr.mxu0 0.0
    %286 = vmatpush1.msra.mxu0 0.0
    %287 = vmatprep.subr.mxu0 0.0
    %288 = vmatpush1.msra.mxu0 0.0
    %289 = vmatprep.subr.mxu0 0.0
    %290 = vmatpush1.msra.mxu0 0.0
    %291 = vmatprep.subr.mxu0 0.0
    %292 = vmatpush1.msra.mxu0 0.0
    %293 = vmatprep.mubr.f32.mxu0 0.0
    %294 = vmatmul.mubr.f32.gmra.mrb[0].mxu0 %v227
    %v295 = vpop.f32.mrb[0].mxu0
    %v296 = vadd.f32 0.0, %v295
    %v297 = vpop.f32.mrb[0].mxu0
    %298 = vdwg.mxu0
    %v300 = vrot.slane %v296, 6
    %v302 = vadd.f32 %v121, %v300
    %v303 = vtanh.pop %v302
    %v304 = vadd.f32 %v303, 1.0
    %v305 = vmul.f32 %v304, 0.5
    %v307 = vrot.slane %v217, 6
    %v309 = vmul.f32 %v305, %v307
    %311 = vrot.lane.b32.xlu0 %v303, 64
    %v312 = vpop.permute.xlu0 %311
    %v314 = vmul.f32 %v305, %v312
    %316 = vrot.lane.b32.xlu0 %v314, 32
    %v317 = vpop.permute.xlu0 %316
    %v319 = vadd.f32 %v309, %v317
    %v320 = vtanh.pop %v319
    %322 = vrot.lane.b32.xlu0 %v320, 64
    %v323 = vpop.permute.xlu0 %322
    %v325 = vmul.f32 %v305, %v323
    %v327 = vrot.slane %v325, 2
    %328 = vrot.lane.b32.xlu0 %v327, 32
    %v329 = vpop.permute.xlu0 %328
    %v330 = vsel %vm129, %v329, 0
    %332 = vmatprep.subr.mxu0 0.0
    %333 = vmatpush1.msra.mxu0 %v27
    %334 = vmatprep.subr.mxu0 0.0
    %335 = vmatpush1.msra.mxu0 %v28
    %336 = vmatprep.subr.mxu0 0.0
    %337 = vmatpush1.msra.mxu0 %v29
    %338 = vmatprep.subr.mxu0 0.0
    %339 = vmatpush1.msra.mxu0 %v30
    %340 = vmatprep.subr.mxu0 0.0
    %341 = vmatpush1.msra.mxu0 0.0
    %342 = vmatprep.subr.mxu0 0.0
    %343 = vmatpush1.msra.mxu0 0.0
    %344 = vmatprep.subr.mxu0 0.0
    %345 = vmatpush1.msra.mxu0 0.0
    %346 = vmatprep.subr.mxu0 0.0
    %347 = vmatpush1.msra.mxu0 0.0
    %348 = vmatprep.subr.mxu0 0.0
    %349 = vmatpush1.msra.mxu0 0.0
    %350 = vmatprep.subr.mxu0 0.0
    %351 = vmatpush1.msra.mxu0 0.0
    %352 = vmatprep.subr.mxu0 0.0
    %353 = vmatpush1.msra.mxu0 0.0
    %354 = vmatprep.subr.mxu0 0.0
    %355 = vmatpush1.msra.mxu0 0.0
    %356 = vmatprep.subr.mxu0 0.0
    %357 = vmatpush1.msra.mxu0 0.0
    %358 = vmatprep.subr.mxu0 0.0
    %359 = vmatpush1.msra.mxu0 0.0
    %360 = vmatprep.subr.mxu0 0.0
    %361 = vmatpush1.msra.mxu0 0.0
    %362 = vmatprep.subr.mxu0 0.0
    %363 = vmatpush1.msra.mxu0 0.0
    %364 = vmatprep.subr.mxu0 0.0
    %365 = vmatpush1.msra.mxu0 0.0
    %366 = vmatprep.subr.mxu0 0.0
    %367 = vmatpush1.msra.mxu0 0.0
    %368 = vmatprep.subr.mxu0 0.0
    %369 = vmatpush1.msra.mxu0 0.0
    %370 = vmatprep.subr.mxu0 0.0
    %371 = vmatpush1.msra.mxu0 0.0
    %372 = vmatprep.subr.mxu0 0.0
    %373 = vmatpush1.msra.mxu0 0.0
    %374 = vmatprep.subr.mxu0 0.0
    %375 = vmatpush1.msra.mxu0 0.0
    %376 = vmatprep.subr.mxu0 0.0
    %377 = vmatpush1.msra.mxu0 0.0
    %378 = vmatprep.subr.mxu0 0.0
    %379 = vmatpush1.msra.mxu0 0.0
    %380 = vmatprep.subr.mxu0 0.0
    %381 = vmatpush1.msra.mxu0 0.0
    %382 = vmatprep.subr.mxu0 0.0
    %383 = vmatpush1.msra.mxu0 0.0
    %384 = vmatprep.subr.mxu0 0.0
    %385 = vmatpush1.msra.mxu0 0.0
    %386 = vmatprep.subr.mxu0 0.0
    %387 = vmatpush1.msra.mxu0 0.0
    %388 = vmatprep.subr.mxu0 0.0
    %389 = vmatpush1.msra.mxu0 0.0
    %390 = vmatprep.subr.mxu0 0.0
    %391 = vmatpush1.msra.mxu0 0.0
    %392 = vmatprep.subr.mxu0 0.0
    %393 = vmatpush1.msra.mxu0 0.0
    %394 = vmatprep.subr.mxu0 0.0
    %395 = vmatpush1.msra.mxu0 0.0
    %396 = vmatprep.mubr.f32.mxu0 0.0
    %397 = vmatmul.mubr.f32.gmra.mrb[0].mxu0 %v330
    %v398 = vpop.f32.mrb[0].mxu0
    %v399 = vadd.f32 0.0, %v398
    %v400 = vpop.f32.mrb[0].mxu0
    %401 = vdwg.mxu0
    %v403 = vrot.slane %v399, 4
    %v405 = vadd.f32 %v121, %v403
    %v406 = vtanh.pop %v405
    %v407 = vadd.f32 %v406, 1.0
    %v408 = vmul.f32 %v407, 0.5
    %v410 = vrot.slane %v319, 6
    %v412 = vmul.f32 %v408, %v410
    %414 = vrot.lane.b32.xlu0 %v406, 64
    %v415 = vpop.permute.xlu0 %414
    %v417 = vmul.f32 %v408, %v415
    %419 = vrot.lane.b32.xlu0 %v417, 32
    %v420 = vpop.permute.xlu0 %419
    %v422 = vadd.f32 %v412, %v420
    %v423 = vtanh.pop %v422
    %425 = vrot.lane.b32.xlu0 %v423, 64
    %v426 = vpop.permute.xlu0 %425
    %v428 = vmul.f32 %v408, %v426
    %v430 = vrot.slane %v428, 4
    %431 = vrot.lane.b32.xlu0 %v430, 32
    %v432 = vpop.permute.xlu0 %431
    %v433 = vsel %vm129, %v432, 0
    %435 = vmatprep.subr.mxu0 0.0
    %436 = vmatpush1.msra.mxu0 %v27
    %437 = vmatprep.subr.mxu0 0.0
    %438 = vmatpush1.msra.mxu0 %v28
    %439 = vmatprep.subr.mxu0 0.0
    %440 = vmatpush1.msra.mxu0 %v29
    %441 = vmatprep.subr.mxu0 0.0
    %442 = vmatpush1.msra.mxu0 %v30
    %443 = vmatprep.subr.mxu0 0.0
    %444 = vmatpush1.msra.mxu0 0.0
    %445 = vmatprep.subr.mxu0 0.0
    %446 = vmatpush1.msra.mxu0 0.0
    %447 = vmatprep.subr.mxu0 0.0
    %448 = vmatpush1.msra.mxu0 0.0
    %449 = vmatprep.subr.mxu0 0.0
    %450 = vmatpush1.msra.mxu0 0.0
    %451 = vmatprep.subr.mxu0 0.0
    %452 = vmatpush1.msra.mxu0 0.0
    %453 = vmatprep.subr.mxu0 0.0
    %454 = vmatpush1.msra.mxu0 0.0
    %455 = vmatprep.subr.mxu0 0.0
    %456 = vmatpush1.msra.mxu0 0.0
    %457 = vmatprep.subr.mxu0 0.0
    %458 = vmatpush1.msra.mxu0 0.0
    %459 = vmatprep.subr.mxu0 0.0
    %460 = vmatpush1.msra.mxu0 0.0
    %461 = vmatprep.subr.mxu0 0.0
    %462 = vmatpush1.msra.mxu0 0.0
    %463 = vmatprep.subr.mxu0 0.0
    %464 = vmatpush1.msra.mxu0 0.0
    %465 = vmatprep.subr.mxu0 0.0
    %466 = vmatpush1.msra.mxu0 0.0
    %467 = vmatprep.subr.mxu0 0.0
    %468 = vmatpush1.msra.mxu0 0.0
    %469 = vmatprep.subr.mxu0 0.0
    %470 = vmatpush1.msra.mxu0 0.0
    %471 = vmatprep.subr.mxu0 0.0
    %472 = vmatpush1.msra.mxu0 0.0
    %473 = vmatprep.subr.mxu0 0.0
    %474 = vmatpush1.msra.mxu0 0.0
    %475 = vmatprep.subr.mxu0 0.0
    %476 = vmatpush1.msra.mxu0 0.0
    %477 = vmatprep.subr.mxu0 0.0
    %478 = vmatpush1.msra.mxu0 0.0
    %479 = vmatprep.subr.mxu0 0.0
    %480 = vmatpush1.msra.mxu0 0.0
    %481 = vmatprep.subr.mxu0 0.0
    %482 = vmatpush1.msra.mxu0 0.0
    %483 = vmatprep.subr.mxu0 0.0
    %484 = vmatpush1.msra.mxu0 0.0
    %485 = vmatprep.subr.mxu0 0.0
    %486 = vmatpush1.msra.mxu0 0.0
    %487 = vmatprep.subr.mxu0 0.0
    %488 = vmatpush1.msra.mxu0 0.0
    %489 = vmatprep.subr.mxu0 0.0
    %490 = vmatpush1.msra.mxu0 0.0
    %491 = vmatprep.subr.mxu0 0.0
    %492 = vmatpush1.msra.mxu0 0.0
    %493 = vmatprep.subr.mxu0 0.0
    %494 = vmatpush1.msra.mxu0 0.0
    %495 = vmatprep.subr.mxu0 0.0
    %496 = vmatpush1.msra.mxu0 0.0
    %497 = vmatprep.subr.mxu0 0.0
    %498 = vmatpush1.msra.mxu0 0.0
    %499 = vmatprep.mubr.f32.mxu0 0.0
    %500 = vmatmul.mubr.f32.gmra.mrb[0].mxu0 %v433
    %v501 = vpop.f32.mrb[0].mxu0
    %v502 = vadd.f32 0.0, %v501
    %v503 = vpop.f32.mrb[0].mxu0
    %504 = vdwg.mxu0
    %v506 = vrot.slane %v502, 2
    %v508 = vadd.f32 %v121, %v506
    %v509 = vtanh.pop %v508
    %v510 = vadd.f32 %v509, 1.0
    %v511 = vmul.f32 %v510, 0.5
    %v513 = vrot.slane %v422, 6
    %v515 = vmul.f32 %v511, %v513
    %517 = vrot.lane.b32.xlu0 %v509, 64
    %v518 = vpop.permute.xlu0 %517
    %v520 = vmul.f32 %v511, %v518
    %522 = vrot.lane.b32.xlu0 %v520, 32
    %v523 = vpop.permute.xlu0 %522
    %v525 = vadd.f32 %v515, %v523
    %v526 = vtanh.pop %v525
    %528 = vrot.lane.b32.xlu0 %v526, 64
    %v529 = vpop.permute.xlu0 %528
    %v531 = vmul.f32 %v511, %v529
    %v533 = vrot.slane %v531, 6
    %534 = vrot.lane.b32.xlu0 %v533, 32
    %v535 = vpop.permute.xlu0 %534
    %v536 = vsel %vm129, %v535, 0
    %538 = vmatprep.subr.mxu0 0.0
    %539 = vmatpush1.msra.mxu0 %v27
    %540 = vmatprep.subr.mxu0 0.0
    %541 = vmatpush1.msra.mxu0 %v28
    %542 = vmatprep.subr.mxu0 0.0
    %543 = vmatpush1.msra.mxu0 %v29
    %544 = vmatprep.subr.mxu0 0.0
    %545 = vmatpush1.msra.mxu0 %v30
    %546 = vmatprep.subr.mxu0 0.0
    %547 = vmatpush1.msra.mxu0 0.0
    %548 = vmatprep.subr.mxu0 0.0
    %549 = vmatpush1.msra.mxu0 0.0
    %550 = vmatprep.subr.mxu0 0.0
    %551 = vmatpush1.msra.mxu0 0.0
    %552 = vmatprep.subr.mxu0 0.0
    %553 = vmatpush1.msra.mxu0 0.0
    %554 = vmatprep.subr.mxu0 0.0
    %555 = vmatpush1.msra.mxu0 0.0
    %556 = vmatprep.subr.mxu0 0.0
    %557 = vmatpush1.msra.mxu0 0.0
    %558 = vmatprep.subr.mxu0 0.0
    %559 = vmatpush1.msra.mxu0 0.0
    %560 = vmatprep.subr.mxu0 0.0
    %561 = vmatpush1.msra.mxu0 0.0
    %562 = vmatprep.subr.mxu0 0.0
    %563 = vmatpush1.msra.mxu0 0.0
    %564 = vmatprep.subr.mxu0 0.0
    %565 = vmatpush1.msra.mxu0 0.0
    %566 = vmatprep.subr.mxu0 0.0
    %567 = vmatpush1.msra.mxu0 0.0
    %568 = vmatprep.subr.mxu0 0.0
    %569 = vmatpush1.msra.mxu0 0.0
    %570 = vmatprep.subr.mxu0 0.0
    %571 = vmatpush1.msra.mxu0 0.0
    %572 = vmatprep.subr.mxu0 0.0
    %573 = vmatpush1.msra.mxu0 0.0
    %574 = vmatprep.subr.mxu0 0.0
    %575 = vmatpush1.msra.mxu0 0.0
    %576 = vmatprep.subr.mxu0 0.0
    %577 = vmatpush1.msra.mxu0 0.0
    %578 = vmatprep.subr.mxu0 0.0
    %579 = vmatpush1.msra.mxu0 0.0
    %580 = vmatprep.subr.mxu0 0.0
    %581 = vmatpush1.msra.mxu0 0.0
    %582 = vmatprep.subr.mxu0 0.0
    %583 = vmatpush1.msra.mxu0 0.0
    %584 = vmatprep.subr.mxu0 0.0
    %585 = vmatpush1.msra.mxu0 0.0
    %586 = vmatprep.subr.mxu0 0.0
    %587 = vmatpush1.msra.mxu0 0.0
    %588 = vmatprep.subr.mxu0 0.0
    %589 = vmatpush1.msra.mxu0 0.0
    %590 = vmatprep.subr.mxu0 0.0
    %591 = vmatpush1.msra.mxu0 0.0
    %592 = vmatprep.subr.mxu0 0.0
    %593 = vmatpush1.msra.mxu0 0.0
    %594 = vmatprep.subr.mxu0 0.0
    %595 = vmatpush1.msra.mxu0 0.0
    %596 = vmatprep.subr.mxu0 0.0
    %597 = vmatpush1.msra.mxu0 0.0
    %598 = vmatprep.subr.mxu0 0.0
    %599 = vmatpush1.msra.mxu0 0.0
    %600 = vmatprep.subr.mxu0 0.0
    %601 = vmatpush1.msra.mxu0 0.0
    %602 = vmatprep.mubr.f32.mxu0 0.0
    %603 = vmatmul.mubr.f32.gmra.mrb[0].mxu0 %v536
    %v604 = vpop.f32.mrb[0].mxu0
    %v605 = vadd.f32 0.0, %v604
    %v606 = vpop.f32.mrb[0].mxu0
    %607 = vdwg.mxu0
    %v608 = vadd.f32 %v126, %v605
    %v609 = vtanh.pop %v608
    %v610 = vadd.f32 %v609, 1.0
    %v611 = vmul.f32 %v610, 0.5
    %v613 = vrot.slane %v525, 6
    %v615 = vmul.f32 %v611, %v613
    %617 = vrot.lane.b32.xlu0 %v609, 64
    %v618 = vpop.permute.xlu0 %617
    %v620 = vmul.f32 %v611, %v618
    %622 = vrot.lane.b32.xlu0 %v620, 32
    %v623 = vpop.permute.xlu0 %622
    %v625 = vadd.f32 %v615, %v623
    %v626 = vtanh.pop %v625
    %628 = vrot.lane.b32.xlu0 %v626, 64
    %v629 = vpop.permute.xlu0 %628
    %v631 = vmul.f32 %v611, %v629
    %633 = vrot.lane.b32.xlu0 %v631, 32
    %v634 = vpop.permute.xlu0 %633
    %v635 = vsel %vm129, %v634, 0
    %637 = vmatprep.subr.mxu0 0.0
    %638 = vmatpush1.msra.mxu0 %v27
    %639 = vmatprep.subr.mxu0 0.0
    %640 = vmatpush1.msra.mxu0 %v28
    %641 = vmatprep.subr.mxu0 0.0
    %642 = vmatpush1.msra.mxu0 %v29
    %643 = vmatprep.subr.mxu0 0.0
    %644 = vmatpush1.msra.mxu0 %v30
    %645 = vmatprep.subr.mxu0 0.0
    %646 = vmatpush1.msra.mxu0 0.0
    %647 = vmatprep.subr.mxu0 0.0
    %648 = vmatpush1.msra.mxu0 0.0
    %649 = vmatprep.subr.mxu0 0.0
    %650 = vmatpush1.msra.mxu0 0.0
    %651 = vmatprep.subr.mxu0 0.0
    %652 = vmatpush1.msra.mxu0 0.0
    %653 = vmatprep.subr.mxu0 0.0
    %654 = vmatpush1.msra.mxu0 0.0
    %655 = vmatprep.subr.mxu0 0.0
    %656 = vmatpush1.msra.mxu0 0.0
    %657 = vmatprep.subr.mxu0 0.0
    %658 = vmatpush1.msra.mxu0 0.0
    %659 = vmatprep.subr.mxu0 0.0
    %660 = vmatpush1.msra.mxu0 0.0
    %661 = vmatprep.subr.mxu0 0.0
    %662 = vmatpush1.msra.mxu0 0.0
    %663 = vmatprep.subr.mxu0 0.0
    %664 = vmatpush1.msra.mxu0 0.0
    %665 = vmatprep.subr.mxu0 0.0
    %666 = vmatpush1.msra.mxu0 0.0
    %667 = vmatprep.subr.mxu0 0.0
    %668 = vmatpush1.msra.mxu0 0.0
    %669 = vmatprep.subr.mxu0 0.0
    %670 = vmatpush1.msra.mxu0 0.0
    %671 = vmatprep.subr.mxu0 0.0
    %672 = vmatpush1.msra.mxu0 0.0
    %673 = vmatprep.subr.mxu0 0.0
    %674 = vmatpush1.msra.mxu0 0.0
    %675 = vmatprep.subr.mxu0 0.0
    %676 = vmatpush1.msra.mxu0 0.0
    %677 = vmatprep.subr.mxu0 0.0
    %678 = vmatpush1.msra.mxu0 0.0
    %679 = vmatprep.subr.mxu0 0.0
    %680 = vmatpush1.msra.mxu0 0.0
    %681 = vmatprep.subr.mxu0 0.0
    %682 = vmatpush1.msra.mxu0 0.0
    %683 = vmatprep.subr.mxu0 0.0
    %684 = vmatpush1.msra.mxu0 0.0
    %685 = vmatprep.subr.mxu0 0.0
    %686 = vmatpush1.msra.mxu0 0.0
    %687 = vmatprep.subr.mxu0 0.0
    %688 = vmatpush1.msra.mxu0 0.0
    %689 = vmatprep.subr.mxu0 0.0
    %690 = vmatpush1.msra.mxu0 0.0
    %691 = vmatprep.subr.mxu0 0.0
    %692 = vmatpush1.msra.mxu0 0.0
    %693 = vmatprep.subr.mxu0 0.0
    %694 = vmatpush1.msra.mxu0 0.0
    %695 = vmatprep.subr.mxu0 0.0
    %696 = vmatpush1.msra.mxu0 0.0
    %697 = vmatprep.subr.mxu0 0.0
    %698 = vmatpush1.msra.mxu0 0.0
    %699 = vmatprep.subr.mxu0 0.0
    %700 = vmatpush1.msra.mxu0 0.0
    %701 = vmatprep.mubr.f32.mxu0 0.0
    %702 = vmatmul.mubr.f32.gmra.mrb[0].mxu0 %v635
    %v703 = vpop.f32.mrb[0].mxu0
    %v704 = vadd.f32 0.0, %v703
    %v705 = vpop.f32.mrb[0].mxu0
    %706 = vdwg.mxu0
    %v708 = vrot.slane %v704, 6
    %v710 = vadd.f32 %v126, %v708
    %v711 = vtanh.pop %v710
    %v712 = vadd.f32 %v711, 1.0
    %v713 = vmul.f32 %v712, 0.5
    %v715 = vrot.slane %v625, 6
    %v717 = vmul.f32 %v713, %v715
    %719 = vrot.lane.b32.xlu0 %v711, 64
    %v720 = vpop.permute.xlu0 %719
    %v722 = vmul.f32 %v713, %v720
    %724 = vrot.lane.b32.xlu0 %v722, 32
    %v725 = vpop.permute.xlu0 %724
    %v727 = vadd.f32 %v717, %v725
    %v728 = vtanh.pop %v727
    %730 = vrot.lane.b32.xlu0 %v728, 64
    %v731 = vpop.permute.xlu0 %730
    %v733 = vmul.f32 %v713, %v731
    %v735 = vrot.slane %v733, 2
    %736 = vrot.lane.b32.xlu0 %v735, 32
    %v737 = vpop.permute.xlu0 %736
    %v738 = vsel %vm129, %v737, 0
    %740 = vmatprep.subr.mxu0 0.0
    %741 = vmatpush1.msra.mxu0 %v27
    %742 = vmatprep.subr.mxu0 0.0
    %743 = vmatpush1.msra.mxu0 %v28
    %744 = vmatprep.subr.mxu0 0.0
    %745 = vmatpush1.msra.mxu0 %v29
    %746 = vmatprep.subr.mxu0 0.0
    %747 = vmatpush1.msra.mxu0 %v30
    %748 = vmatprep.subr.mxu0 0.0
    %749 = vmatpush1.msra.mxu0 0.0
    %750 = vmatprep.subr.mxu0 0.0
    %751 = vmatpush1.msra.mxu0 0.0
    %752 = vmatprep.subr.mxu0 0.0
    %753 = vmatpush1.msra.mxu0 0.0
    %754 = vmatprep.subr.mxu0 0.0
    %755 = vmatpush1.msra.mxu0 0.0
    %756 = vmatprep.subr.mxu0 0.0
    %757 = vmatpush1.msra.mxu0 0.0
    %758 = vmatprep.subr.mxu0 0.0
    %759 = vmatpush1.msra.mxu0 0.0
    %760 = vmatprep.subr.mxu0 0.0
    %761 = vmatpush1.msra.mxu0 0.0
    %762 = vmatprep.subr.mxu0 0.0
    %763 = vmatpush1.msra.mxu0 0.0
    %764 = vmatprep.subr.mxu0 0.0
    %765 = vmatpush1.msra.mxu0 0.0
    %766 = vmatprep.subr.mxu0 0.0
    %767 = vmatpush1.msra.mxu0 0.0
    %768 = vmatprep.subr.mxu0 0.0
    %769 = vmatpush1.msra.mxu0 0.0
    %770 = vmatprep.subr.mxu0 0.0
    %771 = vmatpush1.msra.mxu0 0.0
    %772 = vmatprep.subr.mxu0 0.0
    %773 = vmatpush1.msra.mxu0 0.0
    %774 = vmatprep.subr.mxu0 0.0
    %775 = vmatpush1.msra.mxu0 0.0
    %776 = vmatprep.subr.mxu0 0.0
    %777 = vmatpush1.msra.mxu0 0.0
    %778 = vmatprep.subr.mxu0 0.0
    %779 = vmatpush1.msra.mxu0 0.0
    %780 = vmatprep.subr.mxu0 0.0
    %781 = vmatpush1.msra.mxu0 0.0
    %782 = vmatprep.subr.mxu0 0.0
    %783 = vmatpush1.msra.mxu0 0.0
    %784 = vmatprep.subr.mxu0 0.0
    %785 = vmatpush1.msra.mxu0 0.0
    %786 = vmatprep.subr.mxu0 0.0
    %787 = vmatpush1.msra.mxu0 0.0
    %788 = vmatprep.subr.mxu0 0.0
    %789 = vmatpush1.msra.mxu0 0.0
    %790 = vmatprep.subr.mxu0 0.0
    %791 = vmatpush1.msra.mxu0 0.0
    %792 = vmatprep.subr.mxu0 0.0
    %793 = vmatpush1.msra.mxu0 0.0
    %794 = vmatprep.subr.mxu0 0.0
    %795 = vmatpush1.msra.mxu0 0.0
    %796 = vmatprep.subr.mxu0 0.0
    %797 = vmatpush1.msra.mxu0 0.0
    %798 = vmatprep.subr.mxu0 0.0
    %799 = vmatpush1.msra.mxu0 0.0
    %800 = vmatprep.subr.mxu0 0.0
    %801 = vmatpush1.msra.mxu0 0.0
    %802 = vmatprep.subr.mxu0 0.0
    %803 = vmatpush1.msra.mxu0 0.0
    %804 = vmatprep.mubr.f32.mxu0 0.0
    %805 = vmatmul.mubr.f32.gmra.mrb[0].mxu0 %v738
    %v806 = vpop.f32.mrb[0].mxu0
    %v807 = vadd.f32 0.0, %v806
    %v808 = vpop.f32.mrb[0].mxu0
    %809 = vdwg.mxu0
    %v811 = vrot.slane %v807, 4
    %v813 = vadd.f32 %v126, %v811
    %v814 = vtanh.pop %v813
    %v815 = vadd.f32 %v814, 1.0
    %v816 = vmul.f32 %v815, 0.5
    %v818 = vrot.slane %v727, 6
    %v820 = vmul.f32 %v816, %v818
    %822 = vrot.lane.b32.xlu0 %v814, 64
    %v823 = vpop.permute.xlu0 %822
    %v825 = vmul.f32 %v816, %v823
    %827 = vrot.lane.b32.xlu0 %v825, 32
    %v828 = vpop.permute.xlu0 %827
    %v830 = vadd.f32 %v820, %v828
    %v831 = vtanh.pop %v830
    %833 = vrot.lane.b32.xlu0 %v831, 64
    %v834 = vpop.permute.xlu0 %833
    %v836 = vmul.f32 %v816, %v834
    %v838 = vrot.slane %v836, 4
    %839 = vrot.lane.b32.xlu0 %v838, 32
    %v840 = vpop.permute.xlu0 %839
    %v841 = vsel %vm129, %v840, 0
    %843 = vmatprep.subr.mxu0 0.0
    %844 = vmatpush1.msra.mxu0 %v27
    %845 = vmatprep.subr.mxu0 0.0
    %846 = vmatpush1.msra.mxu0 %v28
    %847 = vmatprep.subr.mxu0 0.0
    %848 = vmatpush1.msra.mxu0 %v29
    %849 = vmatprep.subr.mxu0 0.0
    %850 = vmatpush1.msra.mxu0 %v30
    %851 = vmatprep.subr.mxu0 0.0
    %852 = vmatpush1.msra.mxu0 0.0
    %853 = vmatprep.subr.mxu0 0.0
    %854 = vmatpush1.msra.mxu0 0.0
    %855 = vmatprep.subr.mxu0 0.0
    %856 = vmatpush1.msra.mxu0 0.0
    %857 = vmatprep.subr.mxu0 0.0
    %858 = vmatpush1.msra.mxu0 0.0
    %859 = vmatprep.subr.mxu0 0.0
    %860 = vmatpush1.msra.mxu0 0.0
    %861 = vmatprep.subr.mxu0 0.0
    %862 = vmatpush1.msra.mxu0 0.0
    %863 = vmatprep.subr.mxu0 0.0
    %864 = vmatpush1.msra.mxu0 0.0
    %865 = vmatprep.subr.mxu0 0.0
    %866 = vmatpush1.msra.mxu0 0.0
    %867 = vmatprep.subr.mxu0 0.0
    %868 = vmatpush1.msra.mxu0 0.0
    %869 = vmatprep.subr.mxu0 0.0
    %870 = vmatpush1.msra.mxu0 0.0
    %871 = vmatprep.subr.mxu0 0.0
    %872 = vmatpush1.msra.mxu0 0.0
    %873 = vmatprep.subr.mxu0 0.0
    %874 = vmatpush1.msra.mxu0 0.0
    %875 = vmatprep.subr.mxu0 0.0
    %876 = vmatpush1.msra.mxu0 0.0
    %877 = vmatprep.subr.mxu0 0.0
    %878 = vmatpush1.msra.mxu0 0.0
    %879 = vmatprep.subr.mxu0 0.0
    %880 = vmatpush1.msra.mxu0 0.0
    %881 = vmatprep.subr.mxu0 0.0
    %882 = vmatpush1.msra.mxu0 0.0
    %883 = vmatprep.subr.mxu0 0.0
    %884 = vmatpush1.msra.mxu0 0.0
    %885 = vmatprep.subr.mxu0 0.0
    %886 = vmatpush1.msra.mxu0 0.0
    %887 = vmatprep.subr.mxu0 0.0
    %888 = vmatpush1.msra.mxu0 0.0
    %889 = vmatprep.subr.mxu0 0.0
    %890 = vmatpush1.msra.mxu0 0.0
    %891 = vmatprep.subr.mxu0 0.0
    %892 = vmatpush1.msra.mxu0 0.0
    %893 = vmatprep.subr.mxu0 0.0
    %894 = vmatpush1.msra.mxu0 0.0
    %895 = vmatprep.subr.mxu0 0.0
    %896 = vmatpush1.msra.mxu0 0.0
    %897 = vmatprep.subr.mxu0 0.0
    %898 = vmatpush1.msra.mxu0 0.0
    %899 = vmatprep.subr.mxu0 0.0
    %900 = vmatpush1.msra.mxu0 0.0
    %901 = vmatprep.subr.mxu0 0.0
    %902 = vmatpush1.msra.mxu0 0.0
    %903 = vmatprep.subr.mxu0 0.0
    %904 = vmatpush1.msra.mxu0 0.0
    %905 = vmatprep.subr.mxu0 0.0
    %906 = vmatpush1.msra.mxu0 0.0
    %907 = vmatprep.mubr.f32.mxu0 0.0
    %908 = vmatmul.mubr.f32.gmra.mrb[0].mxu0 %v841
    %v909 = vpop.f32.mrb[0].mxu0
    %v910 = vadd.f32 0.0, %v909
    %v911 = vpop.f32.mrb[0].mxu0
    %912 = vdwg.mxu0
    %v914 = vrot.slane %v910, 2
    %v916 = vadd.f32 %v126, %v914
    %v917 = vtanh.pop %v916
    %v918 = vadd.f32 %v917, 1.0
    %v919 = vmul.f32 %v918, 0.5
    %v921 = vrot.slane %v830, 6
    %v923 = vmul.f32 %v919, %v921
    %925 = vrot.lane.b32.xlu0 %v917, 64
    %v926 = vpop.permute.xlu0 %925
    %v928 = vmul.f32 %v919, %v926
    %930 = vrot.lane.b32.xlu0 %v928, 32
    %v931 = vpop.permute.xlu0 %930
    %v933 = vadd.f32 %v923, %v931
    %v934 = vtanh.pop %v933
    %936 = vrot.lane.b32.xlu0 %v934, 64
    %v937 = vpop.permute.xlu0 %936
    %v939 = vmul.f32 %v919, %v937
    %vm940 = vcmask 1041408
    %v941 = vsel %vm940, %v223, %v325
    %v942 = vsel %vm50, %v941, %v428
    %vm943 = vcmask 1045504
    %v944 = vsel %vm943, %v942, %v531
    %v945 = vsel %vm940, %v631, %v733
    %v946 = vsel %vm50, %v945, %v836
    %v947 = vsel %vm943, %v946, %v939
    %v948 = vlaneseq
    %v949 = vshrl.u32 %v948, 7
    %v950 = vsub.s32 0, %v949
    %v951 = vrot.slane %v36, %v950
    %954 = vrot.lane.b32.xlu0 %v944, 32
    %v955 = vpop.permute.xlu0 %954
    %956 = vrot.lane.b32.xlu0 %v947, 32
    %v957 = vpop.permute.xlu0 %956
    %v958 = vsel %vm129, %v955, 0
    %v960 = vsel %vm129, %v957, 0
    %962 = vmatprep.subr.mxu0 0.0
    %963 = vmatpush1.msra.mxu0 %v32
    %964 = vmatprep.subr.mxu0 0.0
    %965 = vmatpush1.msra.mxu0 %v33
    %966 = vmatprep.subr.mxu0 0.0
    %967 = vmatpush1.msra.mxu0 %v34
    %968 = vmatprep.subr.mxu0 0.0
    %969 = vmatpush1.msra.mxu0 %v35
    %970 = vmatprep.subr.mxu0 0.0
    %971 = vmatpush1.msra.mxu0 0.0
    %972 = vmatprep.subr.mxu0 0.0
    %973 = vmatpush1.msra.mxu0 0.0
    %974 = vmatprep.subr.mxu0 0.0
    %975 = vmatpush1.msra.mxu0 0.0
    %976 = vmatprep.subr.mxu0 0.0
    %977 = vmatpush1.msra.mxu0 0.0
    %978 = vmatprep.subr.mxu0 0.0
    %979 = vmatpush1.msra.mxu0 0.0
    %980 = vmatprep.subr.mxu0 0.0
    %981 = vmatpush1.msra.mxu0 0.0
    %982 = vmatprep.subr.mxu0 0.0
    %983 = vmatpush1.msra.mxu0 0.0
    %984 = vmatprep.subr.mxu0 0.0
    %985 = vmatpush1.msra.mxu0 0.0
    %986 = vmatprep.subr.mxu0 0.0
    %987 = vmatpush1.msra.mxu0 0.0
    %988 = vmatprep.subr.mxu0 0.0
    %989 = vmatpush1.msra.mxu0 0.0
    %990 = vmatprep.subr.mxu0 0.0
    %991 = vmatpush1.msra.mxu0 0.0
    %992 = vmatprep.subr.mxu0 0.0
    %993 = vmatpush1.msra.mxu0 0.0
    %994 = vmatprep.subr.mxu0 0.0
    %995 = vmatpush1.msra.mxu0 0.0
    %996 = vmatprep.subr.mxu0 0.0
    %997 = vmatpush1.msra.mxu0 0.0
    %998 = vmatprep.subr.mxu0 0.0
    %999 = vmatpush1.msra.mxu0 0.0
    %1000 = vmatprep.subr.mxu0 0.0
    %1001 = vmatpush1.msra.mxu0 0.0
    %1002 = vmatprep.subr.mxu0 0.0
    %1003 = vmatpush1.msra.mxu0 0.0
    %1004 = vmatprep.subr.mxu0 0.0
    %1005 = vmatpush1.msra.mxu0 0.0
    %1006 = vmatprep.subr.mxu0 0.0
    %1007 = vmatpush1.msra.mxu0 0.0
    %1008 = vmatprep.subr.mxu0 0.0
    %1009 = vmatpush1.msra.mxu0 0.0
    %1010 = vmatprep.subr.mxu0 0.0
    %1011 = vmatpush1.msra.mxu0 0.0
    %1012 = vmatprep.subr.mxu0 0.0
    %1013 = vmatpush1.msra.mxu0 0.0
    %1014 = vmatprep.subr.mxu0 0.0
    %1015 = vmatpush1.msra.mxu0 0.0
    %1016 = vmatprep.subr.mxu0 0.0
    %1017 = vmatpush1.msra.mxu0 0.0
    %1018 = vmatprep.subr.mxu0 0.0
    %1019 = vmatpush1.msra.mxu0 0.0
    %1020 = vmatprep.subr.mxu0 0.0
    %1021 = vmatpush1.msra.mxu0 0.0
    %1022 = vmatprep.subr.mxu0 0.0
    %1023 = vmatpush1.msra.mxu0 0.0
    %1024 = vmatprep.subr.mxu0 0.0
    %1025 = vmatpush1.msra.mxu0 0.0
    %1026 = vmatprep.mubr.f32.mxu0 0.0
    %1027 = vmatmul.mubr.f32.gmra.mrb[0].mxu0 %v958
    %v1028 = vpop.f32.mrb[0].mxu0
    %v1029 = vadd.f32 %v951, %v1028
    %v1030 = vpop.f32.mrb[0].mxu0
    %1031 = vmatprep.mubr.f32.mxu0 0.0
    %1032 = vmatmul.mubr.f32.gmra.mrb[0].mxu0 %v960
    %v1033 = vpop.f32.mrb[0].mxu0
    %v1034 = vadd.f32 %v951, %v1033
    %v1035 = vpop.f32.mrb[0].mxu0
    %1036 = vdwg.mxu0
    %v1037 = vmax.f32 %v1029, 0.0
    %v1038 = vmax.f32 %v1034, 0.0
    %1039 = vst [vmem:[#allocation5] sm:$0xff] %v1037
    %1040 = vst [vmem:[#allocation5 + $0x8] sm:$0xff] %v1038
    // Predicated region
    $region14: #{tpu_custom_call.1} parent=1 // pred_check
      _
    $region15: #{tpu_custom_call.1} parent=1 // pred_check_branch
      %1042 = sbr.rel (0) target = $region17
    $region16: #{tpu_custom_call.1} parent=1 // pred_region
      %s1044 = ssub.s32 256, 256
      %1045 = vsyncadd [#allocation4], %s1044
      %s1046 = sshll.u32 [#allocation5], 4
      %s1047 = int_to_ptr.vmem [resolvable:$true] %s1046
      %1052 = dma.vmem_to_hbm [thread:$0]  %s1047, 256, %s2, [#allocation4], 128, 128, 8
    $region17: #{tpu_custom_call.1} parent=1 // pred_fallthru
      _
    // Predicated region
    $region18: #{tpu_custom_call.1} parent=1 // pred_check
      _
    $region19: #{tpu_custom_call.1} parent=1 // pred_check_branch
      %1054 = sbr.rel (0) target = $region21
    $region20: #{tpu_custom_call.1} parent=1 // pred_region
      %1055 = dma.done [#allocation4], 256
    $region21: #{tpu_custom_call.1} parent=1 // pred_fallthru
      _
    %1056 = vsyncpa [#allocation3], 1
    %1057 = vsyncpa [#allocation4], 1

</llo_original>
